<compile_context>
chip_gen: v7x
topology: tpu7x:2x2x1
jax: 0.10.0
libtpu: 0.0.40
codegen_flags: <defaults>
</compile_context>

<pallas_src>
import functools

import jax
import jax.numpy as jnp
from jax.experimental import pallas as pl
from jax.experimental.pallas import tpu as pltpu

STATE_DIM = 45
ACTION_DIM = 43
HIDDEN = (256, 256, 128)

IN_PAD = 128    # lane-aligned padded input feature dim  (45 -> 128)
OUT_PAD = 128   # lane-aligned padded output feature dim (43 -> 128)


def _round_up(x, m):
    return ((x + m - 1) // m) * m


def dqn_kernel(x_ref,
               w1_ref, b1_ref,
               w2_ref, b2_ref,
               w3_ref, b3_ref,
               w4_ref, b4_ref,
               o_ref):
    # Matmul operands in the weights' dtype (f32 or bf16); accumulate in f32.
    cdt = w1_ref.dtype
    x = x_ref[...].astype(cdt)

    # Layer 1: Linear(IN_PAD, 256) + ReLU   (bias add / ReLU in f32)
    h = jnp.dot(x, w1_ref[...], preferred_element_type=jnp.float32)
    h = jnp.maximum(h + b1_ref[...], 0.0)
    # Layer 2: Linear(256, 256) + ReLU
    h = jnp.dot(h.astype(cdt), w2_ref[...], preferred_element_type=jnp.float32)
    h = jnp.maximum(h + b2_ref[...], 0.0)
    # Layer 3: Linear(256, 128) + ReLU
    h = jnp.dot(h.astype(cdt), w3_ref[...], preferred_element_type=jnp.float32)
    h = jnp.maximum(h + b3_ref[...], 0.0)
    # Layer 4: Linear(128, OUT_PAD)  (no activation; padded cols are zero)
    out = jnp.dot(h.astype(cdt), w4_ref[...], preferred_element_type=jnp.float32)
    o_ref[...] = (out + b4_ref[...]).astype(o_ref.dtype)


def _auto_block_b(batch):
    # Small batches: one grid step (no pipeline bookkeeping).
    if batch <= 512:
        return _round_up(batch, 8)
    # Large batches: big tile (<=1024 rows) but >=2 parallel steps so the
    # v7x megacore can shard the batch axis; v5e/v6e are unaffected.
    return min(1024, _round_up(pl.cdiv(batch, 2), 8))


@functools.partial(jax.jit, static_argnames=("block_b", "compute_dtype"))
def dqnet_forward(x, params, block_b=None, compute_dtype=jnp.float32):
    """x: [B, STATE_DIM] float32 -> [B, ACTION_DIM] float32."""
    B, sd = x.shape
    assert sd == STATE_DIM
    if block_b is None:
        block_b = _auto_block_b(B)
    block_b = max(8, _round_up(int(block_b), 8))
    b_pad = _round_up(B, block_b)

    (w1, b1), (w2, b2), (w3, b3), (w4, b4) = params

    # Zero-pad to lane-aligned shapes; zero rows/cols contribute nothing, and
    # the wrapper slices the output back to [:B, :ACTION_DIM].
    x_p = jnp.zeros((b_pad, IN_PAD), jnp.float32).at[:B, :STATE_DIM].set(x)
    w1_p = jnp.zeros((IN_PAD, HIDDEN[0]), jnp.float32).at[:STATE_DIM, :].set(w1)
    w4_p = jnp.zeros((HIDDEN[2], OUT_PAD), jnp.float32).at[:, :ACTION_DIM].set(w4)
    b4_p = jnp.zeros((1, OUT_PAD), jnp.float32).at[:, :ACTION_DIM].set(b4)

    cdt = jnp.dtype(compute_dtype)
    weights = [w.astype(cdt) for w in (w1_p, w2, w3, w4_p)]
    biases = [b.astype(jnp.float32) for b in (b1, b2, b3, b4_p)]

    def full_spec(arr):
        # Whole array, same (only) block every grid step -> stays VMEM-resident.
        return pl.BlockSpec(arr.shape, lambda i: (0, 0))

    grid = (b_pad // block_b,)

    flops = 2 * b_pad * (IN_PAD * HIDDEN[0] + HIDDEN[0] * HIDDEN[1]
                         + HIDDEN[1] * HIDDEN[2] + HIDDEN[2] * OUT_PAD)
    bytes_accessed = (x_p.size * 4 + b_pad * OUT_PAD * 4
                      + sum(int(w.size) * w.dtype.itemsize for w in weights)
                      + sum(int(b.size) * 4 for b in biases))
    cost = pl.CostEstimate(flops=flops, transcendentals=0,
                           bytes_accessed=bytes_accessed)

    in_specs = [pl.BlockSpec((block_b, IN_PAD), lambda i: (i, 0))]  # x batch tile
    for w, b in zip(weights, biases):
        in_specs.append(full_spec(w))
        in_specs.append(full_spec(b))

    out = pl.pallas_call(
        dqn_kernel,
        out_shape=jax.ShapeDtypeStruct((b_pad, OUT_PAD), jnp.float32),
        grid_spec=pltpu.PrefetchScalarGridSpec(
            num_scalar_prefetch=0,
            grid=grid,
            in_specs=in_specs,
            out_specs=pl.BlockSpec((block_b, OUT_PAD), lambda i: (i, 0)),
        ),
        compiler_params=pltpu.CompilerParams(
            dimension_semantics=("parallel",),
        ),
        cost_estimate=cost,
    )(x_p,
      weights[0], biases[0],
      weights[1], biases[1],
      weights[2], biases[2],
      weights[3], biases[3])

    return out[:B, :ACTION_DIM]


def init_params(key):
    """Deterministic PyTorch-style init: U(-1/sqrt(fan_in), 1/sqrt(fan_in))."""
    dims = [STATE_DIM, *HIDDEN, ACTION_DIM]
    params = []
    keys = jax.random.split(key, len(dims) - 1)
    for k, fan_in, fan_out in zip(keys, dims[:-1], dims[1:]):
        kw, kb = jax.random.split(k)
        bound = 1.0 / jnp.sqrt(jnp.float32(fan_in))
        # stored as [in, out] so kernel does x @ W
        w = jax.random.uniform(kw, (fan_in, fan_out), jnp.float32, -bound, bound)
        b = jax.random.uniform(kb, (1, fan_out), jnp.float32, -bound, bound)
        params.append((w, b))
    return params


def reference_forward(x, params, compute_dtype=jnp.float32):
    """Pure-JAX reference matching the kernel's casting pattern."""
    cdt = jnp.dtype(compute_dtype)
    h = x
    for i, (w, b) in enumerate(params):
        h = jnp.dot(h.astype(cdt), w.astype(cdt),
                    preferred_element_type=jnp.float32) + b.astype(jnp.float32)
        if i < len(params) - 1:
            h = jnp.maximum(h, 0.0)
    return h


if __name__ == "__main__":
    root = jax.random.PRNGKey(0)
    k_x, k_p = jax.random.split(root)
    params = init_params(k_p)

    # 1) Small f32 batch, single grid step.
    x8 = jax.random.normal(k_x, (8, STATE_DIM), jnp.float32)
    out8 = jax.block_until_ready(dqnet_forward(x8, params))
    ref8 = reference_forward(x8, params)
    assert out8.shape == (8, ACTION_DIM)
    assert jnp.allclose(out8, ref8, atol=1e-4, rtol=1e-4), "f32 mismatch (grid=1)"

    # 2) Forced multi-step grid + batch not divisible by the tile (exercises
    #    batch padding and the parallel batch pipeline).
    x22 = jax.random.normal(jax.random.fold_in(k_x, 1), (22, STATE_DIM), jnp.float32)
    out22 = jax.block_until_ready(dqnet_forward(x22, params, block_b=8))
    ref22 = reference_forward(x22, params)
    assert out22.shape == (22, ACTION_DIM)
    assert jnp.allclose(out22, ref22, atol=1e-4, rtol=1e-4), "f32 mismatch (multi-step)"

    # 3) bf16 matmul operands with f32 accumulation (v6e/v7x fast path),
    #    compared against a matching bf16-cast reference.
    x16 = jax.random.normal(jax.random.fold_in(k_x, 2), (16, STATE_DIM), jnp.float32)
    out16 = jax.block_until_ready(
        dqnet_forward(x16, params, compute_dtype=jnp.bfloat16))
    ref16 = reference_forward(x16, params, compute_dtype=jnp.bfloat16)
    assert out16.shape == (16, ACTION_DIM)
    assert jnp.allclose(out16, ref16, atol=5e-2, rtol=5e-2), "bf16 mismatch"

    print("KERNEL_OK")
</pallas_src>

<mosaic_0001>
module attributes {stable_mosaic.version = 11 : i64} {
  func.func @dqn_kernel(%arg0: i32, %arg1: memref<8x128xf32, #tpu.memory_space<vmem>>, %arg2: memref<128x256xf32, #tpu.memory_space<vmem>>, %arg3: memref<1x256xf32, #tpu.memory_space<vmem>>, %arg4: memref<256x256xf32, #tpu.memory_space<vmem>>, %arg5: memref<1x256xf32, #tpu.memory_space<vmem>>, %arg6: memref<256x128xf32, #tpu.memory_space<vmem>>, %arg7: memref<1x128xf32, #tpu.memory_space<vmem>>, %arg8: memref<128x128xf32, #tpu.memory_space<vmem>>, %arg9: memref<1x128xf32, #tpu.memory_space<vmem>>, %arg10: memref<8x128xf32, #tpu.memory_space<vmem>>) attributes {dimension_semantics = [#tpu.dimension_semantics<parallel>], iteration_bounds = array<i64: 1>, scalar_prefetch = 0 : i64, scratch_operands = 0 : i64, tpu.core_type = #tpu.core_type<tc>, window_params = [{transform_indices = @transform_0, window_bounds = array<i64: 8, 128>}, {pipeline_mode = #tpu.pipeline_mode<synchronous>, transform_indices = @transform_1, window_bounds = array<i64: 128, 256>}, {pipeline_mode = #tpu.pipeline_mode<synchronous>, transform_indices = @transform_2, window_bounds = array<i64: 1, 256>}, {pipeline_mode = #tpu.pipeline_mode<synchronous>, transform_indices = @transform_3, window_bounds = array<i64: 256, 256>}, {pipeline_mode = #tpu.pipeline_mode<synchronous>, transform_indices = @transform_4, window_bounds = array<i64: 1, 256>}, {pipeline_mode = #tpu.pipeline_mode<synchronous>, transform_indices = @transform_5, window_bounds = array<i64: 256, 128>}, {pipeline_mode = #tpu.pipeline_mode<synchronous>, transform_indices = @transform_6, window_bounds = array<i64: 1, 128>}, {pipeline_mode = #tpu.pipeline_mode<synchronous>, transform_indices = @transform_7, window_bounds = array<i64: 128, 128>}, {pipeline_mode = #tpu.pipeline_mode<synchronous>, transform_indices = @transform_8, window_bounds = array<i64: 1, 128>}, {transform_indices = @transform_9, window_bounds = array<i64: 8, 128>}]} {
    %c0 = arith.constant 0 : index
    %c0_0 = arith.constant 0 : index
    %0 = vector.load %arg1[%c0, %c0_0] : memref<8x128xf32, #tpu.memory_space<vmem>>, vector<8x128xf32>
    %c0_1 = arith.constant 0 : index
    %c0_2 = arith.constant 0 : index
    %1 = vector.load %arg2[%c0_1, %c0_2] : memref<128x256xf32, #tpu.memory_space<vmem>>, vector<128x256xf32>
    %cst = arith.constant dense<0.000000e+00> : vector<8x256xf32>
    %2 = tpu.matmul %0, %1, %cst {dimension_numbers = #tpu.dot_dimension_numbers<[1], [0], [0], [1], [0, 0, 1, 1], [], []>} : vector<8x128xf32>, vector<128x256xf32>, vector<8x256xf32> -> vector<8x256xf32>
    %c0_3 = arith.constant 0 : index
    %c0_4 = arith.constant 0 : index
    %3 = vector.load %arg3[%c0_3, %c0_4] : memref<1x256xf32, #tpu.memory_space<vmem>>, vector<1x256xf32>
    %4 = vector.broadcast %3 : vector<1x256xf32> to vector<8x256xf32>
    %5 = arith.addf %2, %4 : vector<8x256xf32>
    %cst_5 = arith.constant 0.000000e+00 : f32
    %6 = vector.broadcast %cst_5 : f32 to vector<8x256xf32>
    %7 = arith.maximumf %5, %6 : vector<8x256xf32>
    %c0_6 = arith.constant 0 : index
    %c0_7 = arith.constant 0 : index
    %8 = vector.load %arg4[%c0_6, %c0_7] : memref<256x256xf32, #tpu.memory_space<vmem>>, vector<256x256xf32>
    %cst_8 = arith.constant dense<0.000000e+00> : vector<8x256xf32>
    %9 = tpu.matmul %7, %8, %cst_8 {dimension_numbers = #tpu.dot_dimension_numbers<[1], [0], [0], [1], [0, 0, 1, 1], [], []>} : vector<8x256xf32>, vector<256x256xf32>, vector<8x256xf32> -> vector<8x256xf32>
    %c0_9 = arith.constant 0 : index
    %c0_10 = arith.constant 0 : index
    %10 = vector.load %arg5[%c0_9, %c0_10] : memref<1x256xf32, #tpu.memory_space<vmem>>, vector<1x256xf32>
    %11 = vector.broadcast %10 : vector<1x256xf32> to vector<8x256xf32>
    %12 = arith.addf %9, %11 : vector<8x256xf32>
    %cst_11 = arith.constant 0.000000e+00 : f32
    %13 = vector.broadcast %cst_11 : f32 to vector<8x256xf32>
    %14 = arith.maximumf %12, %13 : vector<8x256xf32>
    %c0_12 = arith.constant 0 : index
    %c0_13 = arith.constant 0 : index
    %15 = vector.load %arg6[%c0_12, %c0_13] : memref<256x128xf32, #tpu.memory_space<vmem>>, vector<256x128xf32>
    %cst_14 = arith.constant dense<0.000000e+00> : vector<8x128xf32>
    %16 = tpu.matmul %14, %15, %cst_14 {dimension_numbers = #tpu.dot_dimension_numbers<[1], [0], [0], [1], [0, 0, 1, 1], [], []>} : vector<8x256xf32>, vector<256x128xf32>, vector<8x128xf32> -> vector<8x128xf32>
    %c0_15 = arith.constant 0 : index
    %c0_16 = arith.constant 0 : index
    %17 = vector.load %arg7[%c0_15, %c0_16] : memref<1x128xf32, #tpu.memory_space<vmem>>, vector<1x128xf32>
    %18 = vector.broadcast %17 : vector<1x128xf32> to vector<8x128xf32>
    %19 = arith.addf %16, %18 : vector<8x128xf32>
    %cst_17 = arith.constant 0.000000e+00 : f32
    %20 = vector.broadcast %cst_17 : f32 to vector<8x128xf32>
    %21 = arith.maximumf %19, %20 : vector<8x128xf32>
    %c0_18 = arith.constant 0 : index
    %c0_19 = arith.constant 0 : index
    %22 = vector.load %arg8[%c0_18, %c0_19] : memref<128x128xf32, #tpu.memory_space<vmem>>, vector<128x128xf32>
    %cst_20 = arith.constant dense<0.000000e+00> : vector<8x128xf32>
    %23 = tpu.matmul %21, %22, %cst_20 {dimension_numbers = #tpu.dot_dimension_numbers<[1], [0], [0], [1], [0, 0, 1, 1], [], []>} : vector<8x128xf32>, vector<128x128xf32>, vector<8x128xf32> -> vector<8x128xf32>
    %c0_21 = arith.constant 0 : index
    %c0_22 = arith.constant 0 : index
    %24 = vector.load %arg9[%c0_21, %c0_22] : memref<1x128xf32, #tpu.memory_space<vmem>>, vector<1x128xf32>
    %25 = vector.broadcast %24 : vector<1x128xf32> to vector<8x128xf32>
    %26 = arith.addf %23, %25 : vector<8x128xf32>
    %c0_23 = arith.constant 0 : index
    %c0_24 = arith.constant 0 : index
    %27 = vector.load %arg10[%c0_23, %c0_24] : memref<8x128xf32, #tpu.memory_space<vmem>>, vector<8x128xf32>
    tpu.vector_store %arg10[%c0_23, %c0_24], %26 {strides = array<i32>} : memref<8x128xf32, #tpu.memory_space<vmem>>, vector<8x128xf32>,
    return
  }
  func.func @transform_0(%arg0: i32) -> (i32, i32) {
    %c0_i32 = arith.constant 0 : i32
    %c0_i32_0 = arith.constant 0 : i32
    return %arg0, %c0_i32 : i32, i32
  }
  func.func @transform_1(%arg0: i32) -> (i32, i32) {
    %c0_i32 = arith.constant 0 : i32
    %c0_i32_0 = arith.constant 0 : i32
    %c0_i32_1 = arith.constant 0 : i32
    return %c0_i32, %c0_i32_0 : i32, i32
  }
  func.func @transform_2(%arg0: i32) -> (i32, i32) {
    %c0_i32 = arith.constant 0 : i32
    %c0_i32_0 = arith.constant 0 : i32
    %c0_i32_1 = arith.constant 0 : i32
    return %c0_i32, %c0_i32_0 : i32, i32
  }
  func.func @transform_3(%arg0: i32) -> (i32, i32) {
    %c0_i32 = arith.constant 0 : i32
    %c0_i32_0 = arith.constant 0 : i32
    %c0_i32_1 = arith.constant 0 : i32
    return %c0_i32, %c0_i32_0 : i32, i32
  }
  func.func @transform_4(%arg0: i32) -> (i32, i32) {
    %c0_i32 = arith.constant 0 : i32
    %c0_i32_0 = arith.constant 0 : i32
    %c0_i32_1 = arith.constant 0 : i32
    return %c0_i32, %c0_i32_0 : i32, i32
  }
  func.func @transform_5(%arg0: i32) -> (i32, i32) {
    %c0_i32 = arith.constant 0 : i32
    %c0_i32_0 = arith.constant 0 : i32
    %c0_i32_1 = arith.constant 0 : i32
    return %c0_i32, %c0_i32_0 : i32, i32
  }
  func.func @transform_6(%arg0: i32) -> (i32, i32) {
    %c0_i32 = arith.constant 0 : i32
    %c0_i32_0 = arith.constant 0 : i32
    %c0_i32_1 = arith.constant 0 : i32
    return %c0_i32, %c0_i32_0 : i32, i32
  }
  func.func @transform_7(%arg0: i32) -> (i32, i32) {
    %c0_i32 = arith.constant 0 : i32
    %c0_i32_0 = arith.constant 0 : i32
    %c0_i32_1 = arith.constant 0 : i32
    return %c0_i32, %c0_i32_0 : i32, i32
  }
  func.func @transform_8(%arg0: i32) -> (i32, i32) {
    %c0_i32 = arith.constant 0 : i32
    %c0_i32_0 = arith.constant 0 : i32
    %c0_i32_1 = arith.constant 0 : i32
    return %c0_i32, %c0_i32_0 : i32, i32
  }
  func.func @transform_9(%arg0: i32) -> (i32, i32) {
    %c0_i32 = arith.constant 0 : i32
    %c0_i32_0 = arith.constant 0 : i32
    return %arg0, %c0_i32 : i32, i32
  }
}

</mosaic_0001>

<llo_original>
// kernel: dqnet_forward.1
$region0: #{dqnet_forward.1}
  #allocation0 [shape = 'u32[]', space=smem, size = 0x4, offset = 0x4, fixed_abs, tag = 'smem constant byte address 0x4 - core index']
  #allocation1 [shape = 'u32[144,128]{1,0:T(1,128)}', space=vmem, size = 0x12000, scoped, tag = 'internal scratch']
  %s0 = inlined_call_operand.vmem [shape: f32[8,128], index: 0, kind: input, shape index: {}]
  %s1 = inlined_call_operand.vmem [shape: f32[128,256], index: 1, kind: input, shape index: {}]
  %s2 = inlined_call_operand.vmem [shape: f32[1,256], index: 2, kind: input, shape index: {}]
  %s3 = inlined_call_operand.vmem [shape: f32[256,256], index: 3, kind: input, shape index: {}]
  %s4 = inlined_call_operand.vmem [shape: f32[1,256], index: 4, kind: input, shape index: {}]
  %s5 = inlined_call_operand.vmem [shape: f32[256,128], index: 5, kind: input, shape index: {}]
  %s6 = inlined_call_operand.vmem [shape: f32[1,128], index: 6, kind: input, shape index: {}]
  %s7 = inlined_call_operand.vmem [shape: f32[128,128], index: 7, kind: input, shape index: {}]
  %s8 = inlined_call_operand.vmem [shape: f32[1,128], index: 8, kind: input, shape index: {}]
  %s9 = inlined_call_operand.hbm [shape: f32[8,128], index: 9, kind: output, shape index: {}]
  %s10 = sld [smem:[#allocation0]]
  $region46: #{dqnet_forward.1} parent=0
    _
  %s12 = ssub.s32 1, %s10
  %s13 = scalar_select 0, %s12, %s10
  $region1: #{dqnet_forward.1} parent=0
    #allocation2 [shape = 'u8[4096]{0}', space=vmem, size = 0x1000, scoped, tag = 'output window, operand 0, single buffered']
    #allocation3 [shape = 's32[1]{0}', space=sflag, size = 0x4, scoped, tag = 'scoped memory for dqnet_forward.1']
    %14 = vsyncpa [#allocation3], 0
    // Predicated region
    $region2: #{dqnet_forward.1} parent=1 // pred_check
      _
    $region3: #{dqnet_forward.1} parent=1 // pred_check_branch
      %16 = sbr.rel (0) target = $region5
    $region4: #{dqnet_forward.1} parent=1 // pred_region
      _
    $region5: #{dqnet_forward.1} parent=1 // pred_fallthru
      _
    // Predicated region
    $region6: #{dqnet_forward.1} parent=1 // pred_check
      _
    $region7: #{dqnet_forward.1} parent=1 // pred_check_branch
      %18 = sbr.rel (0) target = $region9
    $region8: #{dqnet_forward.1} parent=1 // pred_region
      _
    $region9: #{dqnet_forward.1} parent=1 // pred_fallthru
      _
    // Predicated region
    $region10: #{dqnet_forward.1} parent=1 // pred_check
      _
    $region11: #{dqnet_forward.1} parent=1 // pred_check_branch
      %20 = sbr.rel (0) target = $region13
    $region12: #{dqnet_forward.1} parent=1 // pred_region
      _
    $region13: #{dqnet_forward.1} parent=1 // pred_fallthru
      _
    // Predicated region
    $region14: #{dqnet_forward.1} parent=1 // pred_check
      _
    $region15: #{dqnet_forward.1} parent=1 // pred_check_branch
      %22 = sbr.rel (0) target = $region17
    $region16: #{dqnet_forward.1} parent=1 // pred_region
      _
    $region17: #{dqnet_forward.1} parent=1 // pred_fallthru
      _
    // Predicated region
    $region18: #{dqnet_forward.1} parent=1 // pred_check
      _
    $region19: #{dqnet_forward.1} parent=1 // pred_check_branch
      %24 = sbr.rel (0) target = $region21
    $region20: #{dqnet_forward.1} parent=1 // pred_region
      _
    $region21: #{dqnet_forward.1} parent=1 // pred_fallthru
      _
    // Predicated region
    $region22: #{dqnet_forward.1} parent=1 // pred_check
      _
    $region23: #{dqnet_forward.1} parent=1 // pred_check_branch
      %26 = sbr.rel (0) target = $region25
    $region24: #{dqnet_forward.1} parent=1 // pred_region
      _
    $region25: #{dqnet_forward.1} parent=1 // pred_fallthru
      _
    // Predicated region
    $region26: #{dqnet_forward.1} parent=1 // pred_check
      _
    $region27: #{dqnet_forward.1} parent=1 // pred_check_branch
      %28 = sbr.rel (0) target = $region29
    $region28: #{dqnet_forward.1} parent=1 // pred_region
      _
    $region29: #{dqnet_forward.1} parent=1 // pred_fallthru
      _
    // Predicated region
    $region30: #{dqnet_forward.1} parent=1 // pred_check
      _
    $region31: #{dqnet_forward.1} parent=1 // pred_check_branch
      %30 = sbr.rel (0) target = $region33
    $region32: #{dqnet_forward.1} parent=1 // pred_region
      _
    $region33: #{dqnet_forward.1} parent=1 // pred_fallthru
      _
    // Predicated region
    $region34: #{dqnet_forward.1} parent=1 // pred_check
      _
    $region35: #{dqnet_forward.1} parent=1 // pred_check_branch
      %32 = sbr.rel (0) target = $region37
    $region36: #{dqnet_forward.1} parent=1 // pred_region
      _
    $region37: #{dqnet_forward.1} parent=1 // pred_fallthru
      _
    %v33 = vld [vmem:[%s0] sm:$0xff]
    %v34 = vld [vmem:[%s1] sm:$0xff]
    %v35 = vld [vmem:[%s1 + $0x8] sm:$0xff]
    %v36 = vld [vmem:[%s1 + $0x10] sm:$0xff]
    %v37 = vld [vmem:[%s1 + $0x18] sm:$0xff]
    %v38 = vld [vmem:[%s1 + $0x20] sm:$0xff]
    %v39 = vld [vmem:[%s1 + $0x28] sm:$0xff]
    %v40 = vld [vmem:[%s1 + $0x30] sm:$0xff]
    %v41 = vld [vmem:[%s1 + $0x38] sm:$0xff]
    %v42 = vld [vmem:[%s1 + $0x40] sm:$0xff]
    %v43 = vld [vmem:[%s1 + $0x48] sm:$0xff]
    %v44 = vld [vmem:[%s1 + $0x50] sm:$0xff]
    %v45 = vld [vmem:[%s1 + $0x58] sm:$0xff]
    %v46 = vld [vmem:[%s1 + $0x60] sm:$0xff]
    %v47 = vld [vmem:[%s1 + $0x68] sm:$0xff]
    %v48 = vld [vmem:[%s1 + $0x70] sm:$0xff]
    %v49 = vld [vmem:[%s1 + $0x78] sm:$0xff]
    %v50 = vld [vmem:[%s1 + $0x80] sm:$0xff]
    %v51 = vld [vmem:[%s1 + $0x88] sm:$0xff]
    %v52 = vld [vmem:[%s1 + $0x90] sm:$0xff]
    %v53 = vld [vmem:[%s1 + $0x98] sm:$0xff]
    %v54 = vld [vmem:[%s1 + $0xa0] sm:$0xff]
    %v55 = vld [vmem:[%s1 + $0xa8] sm:$0xff]
    %v56 = vld [vmem:[%s1 + $0xb0] sm:$0xff]
    %v57 = vld [vmem:[%s1 + $0xb8] sm:$0xff]
    %v58 = vld [vmem:[%s1 + $0xc0] sm:$0xff]
    %v59 = vld [vmem:[%s1 + $0xc8] sm:$0xff]
    %v60 = vld [vmem:[%s1 + $0xd0] sm:$0xff]
    %v61 = vld [vmem:[%s1 + $0xd8] sm:$0xff]
    %v62 = vld [vmem:[%s1 + $0xe0] sm:$0xff]
    %v63 = vld [vmem:[%s1 + $0xe8] sm:$0xff]
    %v64 = vld [vmem:[%s1 + $0xf0] sm:$0xff]
    %v65 = vld [vmem:[%s1 + $0xf8] sm:$0xff]
    %v66 = vld [vmem:[%s2] sm:$0x3]
    %v68 = vlaneseq
    %v69 = vshrl.u32 %v68, 7
    %v70 = vsub.s32 0, %v69
    %v71 = vrot.slane %v66, %v70
    %v72 = vlaneseq
    %v73 = vshrl.u32 %v72, 7
    %v74 = vsub.s32 1, %v73
    %v75 = vrot.slane %v66, %v74
    %78 = vmatprep.subr.mxu0 %v35
    %79 = vmatpush1.msra.mxu0 %v34
    %80 = vmatprep.subr.mxu0 %v37
    %81 = vmatpush1.msra.mxu0 %v36
    %82 = vmatprep.subr.mxu0 %v39
    %83 = vmatpush1.msra.mxu0 %v38
    %84 = vmatprep.subr.mxu0 %v41
    %85 = vmatpush1.msra.mxu0 %v40
    %86 = vmatprep.subr.mxu0 %v43
    %87 = vmatpush1.msra.mxu0 %v42
    %88 = vmatprep.subr.mxu0 %v45
    %89 = vmatpush1.msra.mxu0 %v44
    %90 = vmatprep.subr.mxu0 %v47
    %91 = vmatpush1.msra.mxu0 %v46
    %92 = vmatprep.subr.mxu0 %v49
    %93 = vmatpush1.msra.mxu0 %v48
    %94 = vmatprep.subr.mxu0 %v51
    %95 = vmatpush1.msra.mxu0 %v50
    %96 = vmatprep.subr.mxu0 %v53
    %97 = vmatpush1.msra.mxu0 %v52
    %98 = vmatprep.subr.mxu0 %v55
    %99 = vmatpush1.msra.mxu0 %v54
    %100 = vmatprep.subr.mxu0 %v57
    %101 = vmatpush1.msra.mxu0 %v56
    %102 = vmatprep.subr.mxu0 %v59
    %103 = vmatpush1.msra.mxu0 %v58
    %104 = vmatprep.subr.mxu0 %v61
    %105 = vmatpush1.msra.mxu0 %v60
    %106 = vmatprep.subr.mxu0 %v63
    %107 = vmatpush1.msra.mxu0 %v62
    %108 = vmatprep.subr.mxu0 %v65
    %109 = vmatpush1.msra.mxu0 %v64
    %110 = vmatprep.subr.mxu0 0.0
    %111 = vmatpush1.msra.mxu0 0.0
    %112 = vmatprep.subr.mxu0 0.0
    %113 = vmatpush1.msra.mxu0 0.0
    %114 = vmatprep.subr.mxu0 0.0
    %115 = vmatpush1.msra.mxu0 0.0
    %116 = vmatprep.subr.mxu0 0.0
    %117 = vmatpush1.msra.mxu0 0.0
    %118 = vmatprep.subr.mxu0 0.0
    %119 = vmatpush1.msra.mxu0 0.0
    %120 = vmatprep.subr.mxu0 0.0
    %121 = vmatpush1.msra.mxu0 0.0
    %122 = vmatprep.subr.mxu0 0.0
    %123 = vmatpush1.msra.mxu0 0.0
    %124 = vmatprep.subr.mxu0 0.0
    %125 = vmatpush1.msra.mxu0 0.0
    %126 = vmatprep.subr.mxu0 0.0
    %127 = vmatpush1.msra.mxu0 0.0
    %128 = vmatprep.subr.mxu0 0.0
    %129 = vmatpush1.msra.mxu0 0.0
    %130 = vmatprep.subr.mxu0 0.0
    %131 = vmatpush1.msra.mxu0 0.0
    %132 = vmatprep.subr.mxu0 0.0
    %133 = vmatpush1.msra.mxu0 0.0
    %134 = vmatprep.subr.mxu0 0.0
    %135 = vmatpush1.msra.mxu0 0.0
    %136 = vmatprep.subr.mxu0 0.0
    %137 = vmatpush1.msra.mxu0 0.0
    %138 = vmatprep.subr.mxu0 0.0
    %139 = vmatpush1.msra.mxu0 0.0
    %140 = vmatprep.subr.mxu0 0.0
    %141 = vmatpush1.msra.mxu0 0.0
    %142 = vmatprep.mubr.f32.mxu0 0.0
    %143 = vmatmul.mubr.f32.gmra.mrb[0].mxu0 %v33
    %v144 = vpop.f32.mrb[0].mxu0
    %v145 = vadd.f32 %v71, %v144
    %v146 = vpop.f32.mrb[0].mxu0
    %v147 = vadd.f32 %v75, %v146
    %148 = vdwg.mxu0
    %v149 = vmax.f32 %v145, 0.0
    %v150 = vmax.f32 %v147, 0.0
    %v151 = vld [vmem:[%s3] sm:$0xff]
    %v152 = vld [vmem:[%s3 + $0x8] sm:$0xff]
    %v153 = vld [vmem:[%s3 + $0x10] sm:$0xff]
    %v154 = vld [vmem:[%s3 + $0x18] sm:$0xff]
    %v155 = vld [vmem:[%s3 + $0x20] sm:$0xff]
    %v156 = vld [vmem:[%s3 + $0x28] sm:$0xff]
    %v157 = vld [vmem:[%s3 + $0x30] sm:$0xff]
    %v158 = vld [vmem:[%s3 + $0x38] sm:$0xff]
    %v159 = vld [vmem:[%s3 + $0x40] sm:$0xff]
    %v160 = vld [vmem:[%s3 + $0x48] sm:$0xff]
    %v161 = vld [vmem:[%s3 + $0x50] sm:$0xff]
    %v162 = vld [vmem:[%s3 + $0x58] sm:$0xff]
    %v163 = vld [vmem:[%s3 + $0x60] sm:$0xff]
    %v164 = vld [vmem:[%s3 + $0x68] sm:$0xff]
    %v165 = vld [vmem:[%s3 + $0x70] sm:$0xff]
    %v166 = vld [vmem:[%s3 + $0x78] sm:$0xff]
    %v167 = vld [vmem:[%s3 + $0x80] sm:$0xff]
    %v168 = vld [vmem:[%s3 + $0x88] sm:$0xff]
    %v169 = vld [vmem:[%s3 + $0x90] sm:$0xff]
    %v170 = vld [vmem:[%s3 + $0x98] sm:$0xff]
    %v171 = vld [vmem:[%s3 + $0xa0] sm:$0xff]
    %v172 = vld [vmem:[%s3 + $0xa8] sm:$0xff]
    %v173 = vld [vmem:[%s3 + $0xb0] sm:$0xff]
    %v174 = vld [vmem:[%s3 + $0xb8] sm:$0xff]
    %v175 = vld [vmem:[%s3 + $0xc0] sm:$0xff]
    %v176 = vld [vmem:[%s3 + $0xc8] sm:$0xff]
    %v177 = vld [vmem:[%s3 + $0xd0] sm:$0xff]
    %v178 = vld [vmem:[%s3 + $0xd8] sm:$0xff]
    %v179 = vld [vmem:[%s3 + $0xe0] sm:$0xff]
    %v180 = vld [vmem:[%s3 + $0xe8] sm:$0xff]
    %v181 = vld [vmem:[%s3 + $0xf0] sm:$0xff]
    %v182 = vld [vmem:[%s3 + $0xf8] sm:$0xff]
    %v183 = vld [vmem:[%s3 + $0x100] sm:$0xff]
    %v184 = vld [vmem:[%s3 + $0x108] sm:$0xff]
    %v185 = vld [vmem:[%s3 + $0x110] sm:$0xff]
    %v186 = vld [vmem:[%s3 + $0x118] sm:$0xff]
    %v187 = vld [vmem:[%s3 + $0x120] sm:$0xff]
    %v188 = vld [vmem:[%s3 + $0x128] sm:$0xff]
    %v189 = vld [vmem:[%s3 + $0x130] sm:$0xff]
    %v190 = vld [vmem:[%s3 + $0x138] sm:$0xff]
    %v191 = vld [vmem:[%s3 + $0x140] sm:$0xff]
    %v192 = vld [vmem:[%s3 + $0x148] sm:$0xff]
    %v193 = vld [vmem:[%s3 + $0x150] sm:$0xff]
    %v194 = vld [vmem:[%s3 + $0x158] sm:$0xff]
    %v195 = vld [vmem:[%s3 + $0x160] sm:$0xff]
    %v196 = vld [vmem:[%s3 + $0x168] sm:$0xff]
    %v197 = vld [vmem:[%s3 + $0x170] sm:$0xff]
    %v198 = vld [vmem:[%s3 + $0x178] sm:$0xff]
    %v199 = vld [vmem:[%s3 + $0x180] sm:$0xff]
    %v200 = vld [vmem:[%s3 + $0x188] sm:$0xff]
    %v201 = vld [vmem:[%s3 + $0x190] sm:$0xff]
    %v202 = vld [vmem:[%s3 + $0x198] sm:$0xff]
    %v203 = vld [vmem:[%s3 + $0x1a0] sm:$0xff]
    %v204 = vld [vmem:[%s3 + $0x1a8] sm:$0xff]
    %v205 = vld [vmem:[%s3 + $0x1b0] sm:$0xff]
    %v206 = vld [vmem:[%s3 + $0x1b8] sm:$0xff]
    %v207 = vld [vmem:[%s3 + $0x1c0] sm:$0xff]
    %v208 = vld [vmem:[%s3 + $0x1c8] sm:$0xff]
    %v209 = vld [vmem:[%s3 + $0x1d0] sm:$0xff]
    %v210 = vld [vmem:[%s3 + $0x1d8] sm:$0xff]
    %v211 = vld [vmem:[%s3 + $0x1e0] sm:$0xff]
    %v212 = vld [vmem:[%s3 + $0x1e8] sm:$0xff]
    %v213 = vld [vmem:[%s3 + $0x1f0] sm:$0xff]
    %v214 = vld [vmem:[%s3 + $0x1f8] sm:$0xff]
    %v215 = vld [vmem:[%s4] sm:$0x3]
    %v217 = vlaneseq
    %v218 = vshrl.u32 %v217, 7
    %v219 = vsub.s32 0, %v218
    %v220 = vrot.slane %v215, %v219
    %v221 = vlaneseq
    %v222 = vshrl.u32 %v221, 7
    %v223 = vsub.s32 1, %v222
    %v224 = vrot.slane %v215, %v223
    %227 = vmatprep.subr.mxu0 %v152
    %228 = vmatpush1.msra.mxu0 %v151
    %229 = vmatprep.subr.mxu0 %v154
    %230 = vmatpush1.msra.mxu0 %v153
    %231 = vmatprep.subr.mxu0 %v156
    %232 = vmatpush1.msra.mxu0 %v155
    %233 = vmatprep.subr.mxu0 %v158
    %234 = vmatpush1.msra.mxu0 %v157
    %235 = vmatprep.subr.mxu0 %v160
    %236 = vmatpush1.msra.mxu0 %v159
    %237 = vmatprep.subr.mxu0 %v162
    %238 = vmatpush1.msra.mxu0 %v161
    %239 = vmatprep.subr.mxu0 %v164
    %240 = vmatpush1.msra.mxu0 %v163
    %241 = vmatprep.subr.mxu0 %v166
    %242 = vmatpush1.msra.mxu0 %v165
    %243 = vmatprep.subr.mxu0 %v168
    %244 = vmatpush1.msra.mxu0 %v167
    %245 = vmatprep.subr.mxu0 %v170
    %246 = vmatpush1.msra.mxu0 %v169
    %247 = vmatprep.subr.mxu0 %v172
    %248 = vmatpush1.msra.mxu0 %v171
    %249 = vmatprep.subr.mxu0 %v174
    %250 = vmatpush1.msra.mxu0 %v173
    %251 = vmatprep.subr.mxu0 %v176
    %252 = vmatpush1.msra.mxu0 %v175
    %253 = vmatprep.subr.mxu0 %v178
    %254 = vmatpush1.msra.mxu0 %v177
    %255 = vmatprep.subr.mxu0 %v180
    %256 = vmatpush1.msra.mxu0 %v179
    %257 = vmatprep.subr.mxu0 %v182
    %258 = vmatpush1.msra.mxu0 %v181
    %259 = vmatprep.subr.mxu0 %v184
    %260 = vmatpush1.msra.mxu0 %v183
    %261 = vmatprep.subr.mxu0 %v186
    %262 = vmatpush1.msra.mxu0 %v185
    %263 = vmatprep.subr.mxu0 %v188
    %264 = vmatpush1.msra.mxu0 %v187
    %265 = vmatprep.subr.mxu0 %v190
    %266 = vmatpush1.msra.mxu0 %v189
    %267 = vmatprep.subr.mxu0 %v192
    %268 = vmatpush1.msra.mxu0 %v191
    %269 = vmatprep.subr.mxu0 %v194
    %270 = vmatpush1.msra.mxu0 %v193
    %271 = vmatprep.subr.mxu0 %v196
    %272 = vmatpush1.msra.mxu0 %v195
    %273 = vmatprep.subr.mxu0 %v198
    %274 = vmatpush1.msra.mxu0 %v197
    %275 = vmatprep.subr.mxu0 %v200
    %276 = vmatpush1.msra.mxu0 %v199
    %277 = vmatprep.subr.mxu0 %v202
    %278 = vmatpush1.msra.mxu0 %v201
    %279 = vmatprep.subr.mxu0 %v204
    %280 = vmatpush1.msra.mxu0 %v203
    %281 = vmatprep.subr.mxu0 %v206
    %282 = vmatpush1.msra.mxu0 %v205
    %283 = vmatprep.subr.mxu0 %v208
    %284 = vmatpush1.msra.mxu0 %v207
    %285 = vmatprep.subr.mxu0 %v210
    %286 = vmatpush1.msra.mxu0 %v209
    %287 = vmatprep.subr.mxu0 %v212
    %288 = vmatpush1.msra.mxu0 %v211
    %289 = vmatprep.subr.mxu0 %v214
    %290 = vmatpush1.msra.mxu0 %v213
    %291 = vmatprep.mubr.f32.mxu0 %v150
    %292 = vmatmul.mubr.f32.gmra.mrb[0].mxu0 %v149
    %v293 = vpop.f32.mrb[0].mxu0
    %v294 = vadd.f32 %v220, %v293
    %v295 = vpop.f32.mrb[0].mxu0
    %v296 = vadd.f32 %v224, %v295
    %297 = vdwg.mxu0
    %v298 = vmax.f32 %v294, 0.0
    %v299 = vmax.f32 %v296, 0.0
    %v300 = vld [vmem:[%s5] sm:$0xff]
    %v301 = vld [vmem:[%s5 + $0x8] sm:$0xff]
    %v302 = vld [vmem:[%s5 + $0x10] sm:$0xff]
    %v303 = vld [vmem:[%s5 + $0x18] sm:$0xff]
    %v304 = vld [vmem:[%s5 + $0x20] sm:$0xff]
    %v305 = vld [vmem:[%s5 + $0x28] sm:$0xff]
    %v306 = vld [vmem:[%s5 + $0x30] sm:$0xff]
    %v307 = vld [vmem:[%s5 + $0x38] sm:$0xff]
    %v308 = vld [vmem:[%s5 + $0x40] sm:$0xff]
    %v309 = vld [vmem:[%s5 + $0x48] sm:$0xff]
    %v310 = vld [vmem:[%s5 + $0x50] sm:$0xff]
    %v311 = vld [vmem:[%s5 + $0x58] sm:$0xff]
    %v312 = vld [vmem:[%s5 + $0x60] sm:$0xff]
    %v313 = vld [vmem:[%s5 + $0x68] sm:$0xff]
    %v314 = vld [vmem:[%s5 + $0x70] sm:$0xff]
    %v315 = vld [vmem:[%s5 + $0x78] sm:$0xff]
    %v316 = vld [vmem:[%s5 + $0x80] sm:$0xff]
    %v317 = vld [vmem:[%s5 + $0x88] sm:$0xff]
    %v318 = vld [vmem:[%s5 + $0x90] sm:$0xff]
    %v319 = vld [vmem:[%s5 + $0x98] sm:$0xff]
    %v320 = vld [vmem:[%s5 + $0xa0] sm:$0xff]
    %v321 = vld [vmem:[%s5 + $0xa8] sm:$0xff]
    %v322 = vld [vmem:[%s5 + $0xb0] sm:$0xff]
    %v323 = vld [vmem:[%s5 + $0xb8] sm:$0xff]
    %v324 = vld [vmem:[%s5 + $0xc0] sm:$0xff]
    %v325 = vld [vmem:[%s5 + $0xc8] sm:$0xff]
    %v326 = vld [vmem:[%s5 + $0xd0] sm:$0xff]
    %v327 = vld [vmem:[%s5 + $0xd8] sm:$0xff]
    %v328 = vld [vmem:[%s5 + $0xe0] sm:$0xff]
    %v329 = vld [vmem:[%s5 + $0xe8] sm:$0xff]
    %v330 = vld [vmem:[%s5 + $0xf0] sm:$0xff]
    %v331 = vld [vmem:[%s5 + $0xf8] sm:$0xff]
    %v332 = vld [vmem:[%s6] sm:$0x1]
    %v334 = vlaneseq
    %v335 = vshrl.u32 %v334, 7
    %v336 = vsub.s32 0, %v335
    %v337 = vrot.slane %v332, %v336
    %339 = vmatprep.subr.mxu0 0.0
    %340 = vmatpush1.msra.mxu0 %v300
    %341 = vmatprep.subr.mxu0 0.0
    %342 = vmatpush1.msra.mxu0 %v301
    %343 = vmatprep.subr.mxu0 0.0
    %344 = vmatpush1.msra.mxu0 %v302
    %345 = vmatprep.subr.mxu0 0.0
    %346 = vmatpush1.msra.mxu0 %v303
    %347 = vmatprep.subr.mxu0 0.0
    %348 = vmatpush1.msra.mxu0 %v304
    %349 = vmatprep.subr.mxu0 0.0
    %350 = vmatpush1.msra.mxu0 %v305
    %351 = vmatprep.subr.mxu0 0.0
    %352 = vmatpush1.msra.mxu0 %v306
    %353 = vmatprep.subr.mxu0 0.0
    %354 = vmatpush1.msra.mxu0 %v307
    %355 = vmatprep.subr.mxu0 0.0
    %356 = vmatpush1.msra.mxu0 %v308
    %357 = vmatprep.subr.mxu0 0.0
    %358 = vmatpush1.msra.mxu0 %v309
    %359 = vmatprep.subr.mxu0 0.0
    %360 = vmatpush1.msra.mxu0 %v310
    %361 = vmatprep.subr.mxu0 0.0
    %362 = vmatpush1.msra.mxu0 %v311
    %363 = vmatprep.subr.mxu0 0.0
    %364 = vmatpush1.msra.mxu0 %v312
    %365 = vmatprep.subr.mxu0 0.0
    %366 = vmatpush1.msra.mxu0 %v313
    %367 = vmatprep.subr.mxu0 0.0
    %368 = vmatpush1.msra.mxu0 %v314
    %369 = vmatprep.subr.mxu0 0.0
    %370 = vmatpush1.msra.mxu0 %v315
    %371 = vmatprep.subr.mxu0 0.0
    %372 = vmatpush1.msra.mxu0 %v316
    %373 = vmatprep.subr.mxu0 0.0
    %374 = vmatpush1.msra.mxu0 %v317
    %375 = vmatprep.subr.mxu0 0.0
    %376 = vmatpush1.msra.mxu0 %v318
    %377 = vmatprep.subr.mxu0 0.0
    %378 = vmatpush1.msra.mxu0 %v319
    %379 = vmatprep.subr.mxu0 0.0
    %380 = vmatpush1.msra.mxu0 %v320
    %381 = vmatprep.subr.mxu0 0.0
    %382 = vmatpush1.msra.mxu0 %v321
    %383 = vmatprep.subr.mxu0 0.0
    %384 = vmatpush1.msra.mxu0 %v322
    %385 = vmatprep.subr.mxu0 0.0
    %386 = vmatpush1.msra.mxu0 %v323
    %387 = vmatprep.subr.mxu0 0.0
    %388 = vmatpush1.msra.mxu0 %v324
    %389 = vmatprep.subr.mxu0 0.0
    %390 = vmatpush1.msra.mxu0 %v325
    %391 = vmatprep.subr.mxu0 0.0
    %392 = vmatpush1.msra.mxu0 %v326
    %393 = vmatprep.subr.mxu0 0.0
    %394 = vmatpush1.msra.mxu0 %v327
    %395 = vmatprep.subr.mxu0 0.0
    %396 = vmatpush1.msra.mxu0 %v328
    %397 = vmatprep.subr.mxu0 0.0
    %398 = vmatpush1.msra.mxu0 %v329
    %399 = vmatprep.subr.mxu0 0.0
    %400 = vmatpush1.msra.mxu0 %v330
    %401 = vmatprep.subr.mxu0 0.0
    %402 = vmatpush1.msra.mxu0 %v331
    %403 = vmatprep.mubr.f32.mxu0 %v299
    %404 = vmatmul.mubr.f32.gmra.mrb[0].mxu0 %v298
    %v405 = vpop.f32.mrb[0].mxu0
    %v406 = vadd.f32 %v337, %v405
    %v407 = vpop.f32.mrb[0].mxu0
    %408 = vdwg.mxu0
    %v409 = vmax.f32 %v406, 0.0
    %v410 = vld [vmem:[%s7] sm:$0xff]
    %v411 = vld [vmem:[%s7 + $0x8] sm:$0xff]
    %v412 = vld [vmem:[%s7 + $0x10] sm:$0xff]
    %v413 = vld [vmem:[%s7 + $0x18] sm:$0xff]
    %v414 = vld [vmem:[%s7 + $0x20] sm:$0xff]
    %v415 = vld [vmem:[%s7 + $0x28] sm:$0xff]
    %v416 = vld [vmem:[%s7 + $0x30] sm:$0xff]
    %v417 = vld [vmem:[%s7 + $0x38] sm:$0xff]
    %v418 = vld [vmem:[%s7 + $0x40] sm:$0xff]
    %v419 = vld [vmem:[%s7 + $0x48] sm:$0xff]
    %v420 = vld [vmem:[%s7 + $0x50] sm:$0xff]
    %v421 = vld [vmem:[%s7 + $0x58] sm:$0xff]
    %v422 = vld [vmem:[%s7 + $0x60] sm:$0xff]
    %v423 = vld [vmem:[%s7 + $0x68] sm:$0xff]
    %v424 = vld [vmem:[%s7 + $0x70] sm:$0xff]
    %v425 = vld [vmem:[%s7 + $0x78] sm:$0xff]
    %v426 = vld [vmem:[%s8] sm:$0x1]
    %v428 = vlaneseq
    %v429 = vshrl.u32 %v428, 7
    %v430 = vsub.s32 0, %v429
    %v431 = vrot.slane %v426, %v430
    %433 = vmatprep.subr.mxu0 0.0
    %434 = vmatpush1.msra.mxu0 %v410
    %435 = vmatprep.subr.mxu0 0.0
    %436 = vmatpush1.msra.mxu0 %v411
    %437 = vmatprep.subr.mxu0 0.0
    %438 = vmatpush1.msra.mxu0 %v412
    %439 = vmatprep.subr.mxu0 0.0
    %440 = vmatpush1.msra.mxu0 %v413
    %441 = vmatprep.subr.mxu0 0.0
    %442 = vmatpush1.msra.mxu0 %v414
    %443 = vmatprep.subr.mxu0 0.0
    %444 = vmatpush1.msra.mxu0 %v415
    %445 = vmatprep.subr.mxu0 0.0
    %446 = vmatpush1.msra.mxu0 %v416
    %447 = vmatprep.subr.mxu0 0.0
    %448 = vmatpush1.msra.mxu0 %v417
    %449 = vmatprep.subr.mxu0 0.0
    %450 = vmatpush1.msra.mxu0 %v418
    %451 = vmatprep.subr.mxu0 0.0
    %452 = vmatpush1.msra.mxu0 %v419
    %453 = vmatprep.subr.mxu0 0.0
    %454 = vmatpush1.msra.mxu0 %v420
    %455 = vmatprep.subr.mxu0 0.0
    %456 = vmatpush1.msra.mxu0 %v421
    %457 = vmatprep.subr.mxu0 0.0
    %458 = vmatpush1.msra.mxu0 %v422
    %459 = vmatprep.subr.mxu0 0.0
    %460 = vmatpush1.msra.mxu0 %v423
    %461 = vmatprep.subr.mxu0 0.0
    %462 = vmatpush1.msra.mxu0 %v424
    %463 = vmatprep.subr.mxu0 0.0
    %464 = vmatpush1.msra.mxu0 %v425
    %465 = vmatprep.subr.mxu0 0.0
    %466 = vmatpush1.msra.mxu0 0.0
    %467 = vmatprep.subr.mxu0 0.0
    %468 = vmatpush1.msra.mxu0 0.0
    %469 = vmatprep.subr.mxu0 0.0
    %470 = vmatpush1.msra.mxu0 0.0
    %471 = vmatprep.subr.mxu0 0.0
    %472 = vmatpush1.msra.mxu0 0.0
    %473 = vmatprep.subr.mxu0 0.0
    %474 = vmatpush1.msra.mxu0 0.0
    %475 = vmatprep.subr.mxu0 0.0
    %476 = vmatpush1.msra.mxu0 0.0
    %477 = vmatprep.subr.mxu0 0.0
    %478 = vmatpush1.msra.mxu0 0.0
    %479 = vmatprep.subr.mxu0 0.0
    %480 = vmatpush1.msra.mxu0 0.0
    %481 = vmatprep.subr.mxu0 0.0
    %482 = vmatpush1.msra.mxu0 0.0
    %483 = vmatprep.subr.mxu0 0.0
    %484 = vmatpush1.msra.mxu0 0.0
    %485 = vmatprep.subr.mxu0 0.0
    %486 = vmatpush1.msra.mxu0 0.0
    %487 = vmatprep.subr.mxu0 0.0
    %488 = vmatpush1.msra.mxu0 0.0
    %489 = vmatprep.subr.mxu0 0.0
    %490 = vmatpush1.msra.mxu0 0.0
    %491 = vmatprep.subr.mxu0 0.0
    %492 = vmatpush1.msra.mxu0 0.0
    %493 = vmatprep.subr.mxu0 0.0
    %494 = vmatpush1.msra.mxu0 0.0
    %495 = vmatprep.subr.mxu0 0.0
    %496 = vmatpush1.msra.mxu0 0.0
    %497 = vmatprep.mubr.f32.mxu0 0.0
    %498 = vmatmul.mubr.f32.gmra.mrb[0].mxu0 %v409
    %v499 = vpop.f32.mrb[0].mxu0
    %v500 = vadd.f32 %v431, %v499
    %v501 = vpop.f32.mrb[0].mxu0
    %502 = vdwg.mxu0
    %503 = vst [vmem:[#allocation2] sm:$0xff] %v500
    // Predicated region
    $region38: #{dqnet_forward.1} parent=1 // pred_check
      _
    $region39: #{dqnet_forward.1} parent=1 // pred_check_branch
      %505 = sbr.rel (0) target = $region41
    $region40: #{dqnet_forward.1} parent=1 // pred_region
      %s507 = ssub.s32 128, 128
      %508 = vsyncadd [#allocation3], %s507
      %s510 = sshll.u32 [#allocation2], 4
      %s511 = int_to_ptr.vmem [resolvable:$true] %s510
      %513 = dma.vmem_to_hbm [thread:$0]  %s511, 128, %s9, [#allocation3]
    $region41: #{dqnet_forward.1} parent=1 // pred_fallthru
      _
    // Predicated region
    $region42: #{dqnet_forward.1} parent=1 // pred_check
      _
    $region43: #{dqnet_forward.1} parent=1 // pred_check_branch
      %515 = sbr.rel (0) target = $region45
    $region44: #{dqnet_forward.1} parent=1 // pred_region
      %516 = dma.done [#allocation3], 128
    $region45: #{dqnet_forward.1} parent=1 // pred_fallthru
      _
    %517 = vsyncpa [#allocation3], 1

</llo_original>
